<compile_context>
chip_gen: v6e
topology: v6e:2x2x1
jax: 0.10.0
libtpu: 0.0.40
codegen_flags: <defaults>
</compile_context>

<pallas_src>
import functools

import jax
import jax.numpy as jnp
from jax.experimental import pallas as pl
from jax.experimental.pallas import tpu as pltpu

_LANE = 128
_MIB = 1 << 20


def _tpu_budgets():
    """Generation-aware budgets: (block_budget, fused_sample_budget, vmem_cap)."""
    try:
        vmem = int(pltpu.get_tpu_info().vmem_capacity_bytes)
    except Exception:
        vmem = 64 * _MIB  # conservative default (v7x-sized VMEM)
    if vmem >= 100 * _MIB:        # v5e / v6e: 128 MiB per TensorCore
        return 8 * _MIB, 12 * _MIB, 96 * _MIB
    else:                         # v7x: 64 MiB per TensorCore
        return 4 * _MIB, 6 * _MIB, 48 * _MIB


def _vmem_limit(bytes_needed, cap):
    return int(min(cap, max(32 * _MIB, bytes_needed)))


def _choose_spatial_tile(C, HW, itemsize, block_budget):
    """Largest 128-multiple tile width with one (C, T) block <= budget.
    No artificial 8192-lane cap; never wider than the (lane-rounded) row."""
    hw_lane = ((HW + _LANE - 1) // _LANE) * _LANE
    t = block_budget // max(1, C * itemsize)
    t = max(_LANE, (t // _LANE) * _LANE)
    return min(t, hw_lane)


# ----------------------------------------------------------------------------
# Kernels
# ----------------------------------------------------------------------------
def _pool_kernel(x_ref, sum_ref, *, hw, t_hw, ragged):
    # x_ref: (1, C, t_hw).  Accumulate the per-channel spatial sum in f32 in
    # the resident output block.  When HW % t_hw != 0, the last tile's
    # out-of-range lanes hold unspecified data and must be masked; the mask is
    # the identity on full tiles so it is applied unconditionally (cheap VPU).
    t = pl.program_id(1)

    @pl.when(t == 0)
    def _():
        sum_ref[...] = jnp.zeros_like(sum_ref)

    xv = x_ref[...].astype(jnp.float32)
    if ragged:
        lane = jax.lax.broadcasted_iota(jnp.int32, xv.shape, dimension=2)
        xv = jnp.where(t * t_hw + lane < hw, xv, 0.0)
    sum_ref[...] += jnp.sum(xv, axis=-1, keepdims=True)


def _rescale_kernel(x_ref, a_ref, o_ref):
    # x_ref: (1, C, t_hw); a_ref: (1, C, 1) f32 gate.  Multiply in f32, cast
    # only on store (matches the reference numerics; cost hidden under HBM).
    # The ragged output edge needs no masking: OOB stores are dropped.
    o_ref[...] = (x_ref[...].astype(jnp.float32) * a_ref[...]).astype(o_ref.dtype)


def _fused_kernel(x_ref, w1t_ref, b1_ref, w2t_ref, b2_ref, o_ref, *, inv_hw):
    # One whole image resident: pool, squeeze-excite MLP, rescale -> 1r + 1w.
    x = x_ref[...]                                                  # (1, C, HW)
    pooled = jnp.sum(x.astype(jnp.float32), axis=-1) * inv_hw       # (1, C)
    # conv1 (1x1): pooled @ w1^T + b1, via broadcast-mul + reduce (tiny, VPU/XLU)
    h = jnp.sum(pooled[:, :, None] * w1t_ref[...][None, :, :], axis=1)   # (1, Cr)
    h = jnp.maximum(h + b1_ref[...], 0.0)
    # conv2 (1x1): h @ w2^T + b2
    g = jnp.sum(h[:, :, None] * w2t_ref[...][None, :, :], axis=1)        # (1, C)
    g = jax.nn.sigmoid(g + b2_ref[...])
    o_ref[...] = (x.astype(jnp.float32) * g[:, :, None]).astype(o_ref.dtype)


# ----------------------------------------------------------------------------
# Wrapper
# ----------------------------------------------------------------------------
def ca_layer(x_nchw, w1, b1, w2, b2, *, force_two_phase=False):
    """Channel attention.  x: (N, C, H, W); w1: (Cr, C); b1: (Cr,);
    w2: (C, Cr); b2: (C,)."""
    N, C, H, W = x_nchw.shape
    HW = H * W
    itemsize = jnp.dtype(x_nchw.dtype).itemsize
    block_budget, fused_budget, vmem_cap = _tpu_budgets()

    x = x_nchw.reshape(N, C, HW)
    sample_bytes = C * HW * itemsize

    # ---- fused single-pass path: one sample fits in VMEM --------------------
    if (not force_two_phase) and sample_bytes <= fused_budget:
        Cr = w1.shape[0]
        w1t = jnp.transpose(w1).astype(jnp.float32)        # (C, Cr)
        b1r = b1.astype(jnp.float32).reshape(1, Cr)
        w2t = jnp.transpose(w2).astype(jnp.float32)        # (Cr, C)
        b2r = b2.astype(jnp.float32).reshape(1, C)

        kern = functools.partial(_fused_kernel, inv_hw=1.0 / HW)
        out = pl.pallas_call(
            kern,
            out_shape=jax.ShapeDtypeStruct((N, C, HW), x_nchw.dtype),
            grid_spec=pltpu.PrefetchScalarGridSpec(
                num_scalar_prefetch=0,
                grid=(N,),
                in_specs=[
                    pl.BlockSpec((1, C, HW), lambda n: (n, 0, 0)),   # x[n]
                    pl.BlockSpec((C, Cr), lambda n: (0, 0)),         # w1^T
                    pl.BlockSpec((1, Cr), lambda n: (0, 0)),         # b1
                    pl.BlockSpec((Cr, C), lambda n: (0, 0)),         # w2^T
                    pl.BlockSpec((1, C), lambda n: (0, 0)),          # b2
                ],
                out_specs=pl.BlockSpec((1, C, HW), lambda n: (n, 0, 0)),
            ),
            compiler_params=pltpu.CompilerParams(
                dimension_semantics=("parallel",),
                vmem_limit_bytes=_vmem_limit(6 * sample_bytes + 4 * _MIB,
                                             vmem_cap)),
        )(x, w1t, b1r, w2t, b2r)
        return out.reshape(N, C, H, W)

    # ---- two-phase streaming path -------------------------------------------
    t_hw = _choose_spatial_tile(C, HW, itemsize, block_budget)
    n_t = (HW + t_hw - 1) // t_hw
    blk_bytes = C * t_hw * itemsize
    ragged = (HW % t_hw) != 0

    # Phase A: spatially tiled global sum -> (N, C, 1) f32 (no pre-padding).
    pool = functools.partial(_pool_kernel, hw=HW, t_hw=t_hw, ragged=ragged)
    sums = pl.pallas_call(
        pool,
        out_shape=jax.ShapeDtypeStruct((N, C, 1), jnp.float32),
        grid_spec=pltpu.PrefetchScalarGridSpec(
            num_scalar_prefetch=0,
            grid=(N, n_t),
            in_specs=[pl.BlockSpec((1, C, t_hw), lambda n, t: (n, 0, t))],
            out_specs=pl.BlockSpec((1, C, 1), lambda n, t: (n, 0, 0)),
        ),
        compiler_params=pltpu.CompilerParams(
            dimension_semantics=("parallel", "arbitrary"),
            vmem_limit_bytes=_vmem_limit(3 * blk_bytes + 4 * _MIB, vmem_cap)),
    )(x)

    # Squeeze-excite MLP: tiny (N x C), batched across N in plain JAX (f32).
    pooled = sums[:, :, 0] * (1.0 / HW)                         # divide by true HW
    h = jnp.maximum(pooled @ jnp.transpose(w1).astype(jnp.float32)
                    + b1.astype(jnp.float32)[None, :], 0.0)     # (N, Cr)
    gate = jax.nn.sigmoid(h @ jnp.transpose(w2).astype(jnp.float32)
                          + b2.astype(jnp.float32)[None, :])    # (N, C)
    attn = gate[:, :, None]                                     # (N, C, 1) f32

    # Phase B: lane-dense, spatially tiled rescale (no padding, no slice-back).
    out = pl.pallas_call(
        _rescale_kernel,
        out_shape=jax.ShapeDtypeStruct((N, C, HW), x_nchw.dtype),
        grid_spec=pltpu.PrefetchScalarGridSpec(
            num_scalar_prefetch=0,
            grid=(N, n_t),
            in_specs=[
                pl.BlockSpec((1, C, t_hw), lambda n, t: (n, 0, t)),  # x tile
                pl.BlockSpec((1, C, 1), lambda n, t: (n, 0, 0)),     # gate
            ],
            out_specs=pl.BlockSpec((1, C, t_hw), lambda n, t: (n, 0, t)),
        ),
        compiler_params=pltpu.CompilerParams(
            dimension_semantics=("parallel", "parallel"),  # both TCs on v7x
            vmem_limit_bytes=_vmem_limit(5 * blk_bytes + 4 * _MIB, vmem_cap)),
    )(x, attn)

    return out.reshape(N, C, H, W)


def ca_layer_reference(x, w1, b1, w2, b2):
    # Pure-JAX reference matching the PyTorch forward.
    y = jnp.mean(x.astype(jnp.float32), axis=(2, 3), keepdims=True)     # pool
    y = jnp.einsum("rc,nchw->nrhw", w1, y) + b1[None, :, None, None]    # conv1
    y = jnp.maximum(y, 0.0)
    y = jnp.einsum("cr,nrhw->nchw", w2, y) + b2[None, :, None, None]    # conv2
    y = jax.nn.sigmoid(y)
    return (x.astype(jnp.float32) * y).astype(x.dtype)


if __name__ == "__main__":
    # Shapes consistent with the module: channel=8, reduction=4 -> Cr=2.
    N, C, reduction = 2, 8, 4
    Cr = C // reduction

    key = jax.random.PRNGKey(0)
    kx1, kx2, kw1, kb1, kw2, kb2 = jax.random.split(key, 6)

    w1 = jax.random.normal(kw1, (Cr, C), dtype=jnp.float32) * (1.0 / jnp.sqrt(C))
    b1 = jax.random.normal(kb1, (Cr,), dtype=jnp.float32) * 0.1
    w2 = jax.random.normal(kw2, (C, Cr), dtype=jnp.float32) * (1.0 / jnp.sqrt(Cr))
    b2 = jax.random.normal(kb2, (C,), dtype=jnp.float32) * 0.1

    fn = jax.jit(ca_layer, static_argnames=("force_two_phase",))

    # Case 1: 128-aligned spatial extent (fused path).
    x1 = jax.random.normal(kx1, (N, C, 16, 16), dtype=jnp.float32)
    out1 = jax.block_until_ready(fn(x1, w1, b1, w2, b2))
    ref1 = ca_layer_reference(x1, w1, b1, w2, b2)
    assert out1.shape == x1.shape
    assert jnp.allclose(out1, ref1, atol=1e-5, rtol=1e-5), "mismatch (fused, aligned)"

    # Case 2: odd spatial extent (fused path, non-128 HW).
    x2 = jax.random.normal(kx2, (N, C, 13, 13), dtype=jnp.float32)
    out2 = jax.block_until_ready(fn(x2, w1, b1, w2, b2))
    ref2 = ca_layer_reference(x2, w1, b1, w2, b2)
    assert out2.shape == x2.shape
    assert jnp.allclose(out2, ref2, atol=1e-5, rtol=1e-5), "mismatch (fused, odd)"

    # Case 3/4: force the two-phase streaming path (exercises the in-kernel
    # ragged-edge mask in Phase A and the masked edge store in Phase B).
    out3 = jax.block_until_ready(fn(x1, w1, b1, w2, b2, force_two_phase=True))
    assert jnp.allclose(out3, ref1, atol=1e-5, rtol=1e-5), "mismatch (2-phase, aligned)"
    out4 = jax.block_until_ready(fn(x2, w1, b1, w2, b2, force_two_phase=True))
    assert jnp.allclose(out4, ref2, atol=1e-5, rtol=1e-5), "mismatch (2-phase, ragged)"

    print("KERNEL_OK")
</pallas_src>

<mosaic_0001>
module attributes {stable_mosaic.version = 11 : i64} {
  func.func @_fused_kernel(%arg0: i32, %arg1: memref<1x8x256xf32, #tpu.memory_space<vmem>>, %arg2: memref<8x2xf32, #tpu.memory_space<vmem>>, %arg3: memref<1x2xf32, #tpu.memory_space<vmem>>, %arg4: memref<2x8xf32, #tpu.memory_space<vmem>>, %arg5: memref<1x8xf32, #tpu.memory_space<vmem>>, %arg6: memref<1x8x256xf32, #tpu.memory_space<vmem>>) attributes {dimension_semantics = [#tpu.dimension_semantics<parallel>], iteration_bounds = array<i64: 2>, scalar_prefetch = 0 : i64, scratch_operands = 0 : i64, tpu.core_type = #tpu.core_type<tc>, window_params = [{transform_indices = @transform_0, window_bounds = array<i64: 1, 8, 256>}, {pipeline_mode = #tpu.pipeline_mode<synchronous>, transform_indices = @transform_1, window_bounds = array<i64: 8, 2>}, {pipeline_mode = #tpu.pipeline_mode<synchronous>, transform_indices = @transform_2, window_bounds = array<i64: 1, 2>}, {pipeline_mode = #tpu.pipeline_mode<synchronous>, transform_indices = @transform_3, window_bounds = array<i64: 2, 8>}, {pipeline_mode = #tpu.pipeline_mode<synchronous>, transform_indices = @transform_4, window_bounds = array<i64: 1, 8>}, {transform_indices = @transform_5, window_bounds = array<i64: 1, 8, 256>}]} {
    %c0 = arith.constant 0 : index
    %c0_0 = arith.constant 0 : index
    %c0_1 = arith.constant 0 : index
    %0 = vector.load %arg1[%c0, %c0_0, %c0_1] : memref<1x8x256xf32, #tpu.memory_space<vmem>>, vector<1x8x256xf32>
    %cst = arith.constant dense<0.000000e+00> : vector<1x8xf32>
    %1 = vector.multi_reduction <add>, %0, %cst [2] : vector<1x8x256xf32> to vector<1x8xf32>
    %cst_2 = arith.constant 3.906250e-03 : f32
    %2 = vector.broadcast %cst_2 : f32 to vector<1x8xf32>
    %3 = arith.mulf %1, %2 : vector<1x8xf32>
    %4 = vector.shape_cast %3 : vector<1x8xf32> to vector<1x8x1xf32>
    %c0_3 = arith.constant 0 : index
    %c0_4 = arith.constant 0 : index
    %5 = vector.load %arg2[%c0_3, %c0_4] : memref<8x2xf32, #tpu.memory_space<vmem>>, vector<8x2xf32>
    %6 = vector.shape_cast %5 : vector<8x2xf32> to vector<1x8x2xf32>
    %7 = vector.broadcast %4 : vector<1x8x1xf32> to vector<1x8x2xf32>
    %8 = arith.mulf %7, %6 : vector<1x8x2xf32>
    %cst_5 = arith.constant dense<0.000000e+00> : vector<1x2xf32>
    %9 = vector.multi_reduction <add>, %8, %cst_5 [1] : vector<1x8x2xf32> to vector<1x2xf32>
    %c0_6 = arith.constant 0 : index
    %c0_7 = arith.constant 0 : index
    %10 = vector.load %arg3[%c0_6, %c0_7] : memref<1x2xf32, #tpu.memory_space<vmem>>, vector<1x2xf32>
    %11 = arith.addf %9, %10 : vector<1x2xf32>
    %cst_8 = arith.constant 0.000000e+00 : f32
    %12 = vector.broadcast %cst_8 : f32 to vector<1x2xf32>
    %13 = arith.maximumf %11, %12 : vector<1x2xf32>
    %14 = vector.shape_cast %13 : vector<1x2xf32> to vector<1x2x1xf32>
    %c0_9 = arith.constant 0 : index
    %c0_10 = arith.constant 0 : index
    %15 = vector.load %arg4[%c0_9, %c0_10] : memref<2x8xf32, #tpu.memory_space<vmem>>, vector<2x8xf32>
    %16 = vector.shape_cast %15 : vector<2x8xf32> to vector<1x2x8xf32>
    %17 = vector.broadcast %14 : vector<1x2x1xf32> to vector<1x2x8xf32>
    %18 = arith.mulf %17, %16 : vector<1x2x8xf32>
    %cst_11 = arith.constant dense<0.000000e+00> : vector<1x8xf32>
    %19 = vector.multi_reduction <add>, %18, %cst_11 [1] : vector<1x2x8xf32> to vector<1x8xf32>
    %c0_12 = arith.constant 0 : index
    %c0_13 = arith.constant 0 : index
    %20 = vector.load %arg5[%c0_12, %c0_13] : memref<1x8xf32, #tpu.memory_space<vmem>>, vector<1x8xf32>
    %21 = arith.addf %19, %20 : vector<1x8xf32>
    %22 = arith.negf %21 : vector<1x8xf32>
    %23 = math.exp %22 : vector<1x8xf32>
    %cst_14 = arith.constant 1.000000e+00 : f32
    %24 = vector.broadcast %cst_14 : f32 to vector<1x8xf32>
    %25 = arith.addf %24, %23 : vector<1x8xf32>
    %26 = arith.divf %24, %25 : vector<1x8xf32>
    %27 = vector.shape_cast %26 : vector<1x8xf32> to vector<1x8x1xf32>
    %28 = vector.broadcast %27 : vector<1x8x1xf32> to vector<1x8x256xf32>
    %29 = arith.mulf %0, %28 : vector<1x8x256xf32>
    %c0_15 = arith.constant 0 : index
    %c0_16 = arith.constant 0 : index
    %c0_17 = arith.constant 0 : index
    %30 = vector.load %arg6[%c0_15, %c0_16, %c0_17] : memref<1x8x256xf32, #tpu.memory_space<vmem>>, vector<1x8x256xf32>
    tpu.vector_store %arg6[%c0_15, %c0_16, %c0_17], %29 {strides = array<i32>} : memref<1x8x256xf32, #tpu.memory_space<vmem>>, vector<1x8x256xf32>,
    return
  }
  func.func @transform_0(%arg0: i32) -> (i32, i32, i32) {
    %c0_i32 = arith.constant 0 : i32
    %c0_i32_0 = arith.constant 0 : i32
    %c0_i32_1 = arith.constant 0 : i32
    return %arg0, %c0_i32, %c0_i32_0 : i32, i32, i32
  }
  func.func @transform_1(%arg0: i32) -> (i32, i32) {
    %c0_i32 = arith.constant 0 : i32
    %c0_i32_0 = arith.constant 0 : i32
    %c0_i32_1 = arith.constant 0 : i32
    return %c0_i32, %c0_i32_0 : i32, i32
  }
  func.func @transform_2(%arg0: i32) -> (i32, i32) {
    %c0_i32 = arith.constant 0 : i32
    %c0_i32_0 = arith.constant 0 : i32
    %c0_i32_1 = arith.constant 0 : i32
    return %c0_i32, %c0_i32_0 : i32, i32
  }
  func.func @transform_3(%arg0: i32) -> (i32, i32) {
    %c0_i32 = arith.constant 0 : i32
    %c0_i32_0 = arith.constant 0 : i32
    %c0_i32_1 = arith.constant 0 : i32
    return %c0_i32, %c0_i32_0 : i32, i32
  }
  func.func @transform_4(%arg0: i32) -> (i32, i32) {
    %c0_i32 = arith.constant 0 : i32
    %c0_i32_0 = arith.constant 0 : i32
    %c0_i32_1 = arith.constant 0 : i32
    return %c0_i32, %c0_i32_0 : i32, i32
  }
  func.func @transform_5(%arg0: i32) -> (i32, i32, i32) {
    %c0_i32 = arith.constant 0 : i32
    %c0_i32_0 = arith.constant 0 : i32
    %c0_i32_1 = arith.constant 0 : i32
    return %arg0, %c0_i32, %c0_i32_0 : i32, i32, i32
  }
}

</mosaic_0001>

<llo_original>
// kernel: ca_layer.1
$region0: #{ca_layer.1}
  #allocation0 [shape = 'u32[]', space=smem, size = 0x4, offset = 0x4, fixed_abs, tag = 'smem constant byte address 0x4 - core index']
  #allocation1 [shape = 'u32[144,128]{1,0:T(1,128)}', space=vmem, size = 0x12000, scoped, tag = 'internal scratch']
  %s0 = inlined_call_operand.vmem [shape: f32[2,8,256], index: 0, kind: input, shape index: {}]
  %s1 = inlined_call_operand.vmem [shape: f32[8,2], index: 1, kind: input, shape index: {}]
  %s2 = inlined_call_operand.vmem [shape: f32[1,2], index: 2, kind: input, shape index: {}]
  %s3 = inlined_call_operand.vmem [shape: f32[2,8], index: 3, kind: input, shape index: {}]
  %s4 = inlined_call_operand.vmem [shape: f32[1,8], index: 4, kind: input, shape index: {}]
  %s5 = inlined_call_operand.vmem [shape: f32[2,8,256], index: 5, kind: output, shape index: {}]
  %s6 = sld [smem:[#allocation0]]
  $region53: #{ca_layer.1} parent=0
    _
  %s8 = ssub.s32 1, %s6
  %s9 = scalar_select 0, %s8, %s6
  loop: start=0, step=1, limit=4
  $region2: #{ca_layer.1} parent=0 // loop_pre_header
    _
  $region3: #{ca_layer.1} parent=0 // loop_header
    %s11 = sphi 0, %s15
    %p12 = scmp.ge.s32.totalorder %s11, 4
    %s21 = sphi 0, %s23
    %s24 = sphi 0, %s21
    %s25 = sphi 0, %s24
    %s41 = sphi 0, %s25
    %s45 = sphi 0, %s45
    %s47 = sphi 0, %s45
    %s48 = sphi 0, %s47
    %s62 = sphi 0, %s48
    %s66 = sphi 0, %s66
    %s68 = sphi 0, %s66
    %s69 = sphi 0, %s68
    %s83 = sphi 0, %s69
    %s87 = sphi 0, %s87
    %s89 = sphi 0, %s87
    %s90 = sphi 0, %s89
    %s104 = sphi 0, %s90
    %s108 = sphi 0, %s108
    %s110 = sphi 0, %s108
    %s111 = sphi 0, %s110
    %s125 = sphi 0, %s111
    %s131 = sphi 0, %s133
    %s134 = sphi 0, %s131
    %s135 = sphi 0, %s134
    %s151 = sphi 0, %s135
  $region4: #{ca_layer.1} parent=0 // loop_header_branch
    %14 = sbr.rel (%p12) target = $region8
  $region5: #{ca_layer.1} parent=0 // loop_body
    %s16 = ssub.s32 %s11, 1
    %s17 = ssub.s32 %s11, 2
    %s18 = sadd.s32 %s11, 1
    %s19 = ssub.s32 %s11, %s18
    %p20 = scmp.eq.s32.totalorder %s19, 0
    %s22 = sadd.s32 %s21, 1
    %s23 = scalar_select %p20, %s21, %s22
    %p26 = pneg %p20
    %p27 = scmp.eq.s32.totalorder %s11, 1
    %p28 = por %p26, %p27
    %p29 = scmp.ne.s32.totalorder %s21, %s24
    %p30 = scmp.eq.s32.totalorder %s11, 0
    %p31 = por %p29, %p30
    %p32 = scmp.ne.s32.totalorder %s21, %s24
    %p33 = scmp.eq.s32.totalorder %s16, 1
    %p34 = por %p32, %p33
    %p35 = scmp.ne.s32.totalorder %s24, %s25
    %p36 = scmp.eq.s32.totalorder %s16, 0
    %p37 = por %p35, %p36
    %p38 = scmp.ne.s32.totalorder %s24, %s25
    %p39 = scmp.eq.s32.totalorder %s17, 1
    %p40 = por %p38, %p39
    %p42 = scmp.ne.s32.totalorder %s25, %s41
    %p43 = scmp.eq.s32.totalorder %s17, 0
    %p44 = por %p42, %p43
    %s46 = sadd.s32 %s45, 1
    %p49 = scmp.eq.s32.totalorder %s11, 1
    %p50 = scmp.ne.s32.totalorder %s45, %s47
    %p51 = scmp.eq.s32.totalorder %s11, 0
    %p52 = por %p50, %p51
    %p53 = scmp.ne.s32.totalorder %s45, %s47
    %p54 = scmp.eq.s32.totalorder %s16, 1
    %p55 = por %p53, %p54
    %p56 = scmp.ne.s32.totalorder %s47, %s48
    %p57 = scmp.eq.s32.totalorder %s16, 0
    %p58 = por %p56, %p57
    %p59 = scmp.ne.s32.totalorder %s47, %s48
    %p60 = scmp.eq.s32.totalorder %s17, 1
    %p61 = por %p59, %p60
    %p63 = scmp.ne.s32.totalorder %s48, %s62
    %p64 = scmp.eq.s32.totalorder %s17, 0
    %p65 = por %p63, %p64
    %s67 = sadd.s32 %s66, 1
    %p70 = scmp.eq.s32.totalorder %s11, 1
    %p71 = scmp.ne.s32.totalorder %s66, %s68
    %p72 = scmp.eq.s32.totalorder %s11, 0
    %p73 = por %p71, %p72
    %p74 = scmp.ne.s32.totalorder %s66, %s68
    %p75 = scmp.eq.s32.totalorder %s16, 1
    %p76 = por %p74, %p75
    %p77 = scmp.ne.s32.totalorder %s68, %s69
    %p78 = scmp.eq.s32.totalorder %s16, 0
    %p79 = por %p77, %p78
    %p80 = scmp.ne.s32.totalorder %s68, %s69
    %p81 = scmp.eq.s32.totalorder %s17, 1
    %p82 = por %p80, %p81
    %p84 = scmp.ne.s32.totalorder %s69, %s83
    %p85 = scmp.eq.s32.totalorder %s17, 0
    %p86 = por %p84, %p85
    %s88 = sadd.s32 %s87, 1
    %p91 = scmp.eq.s32.totalorder %s11, 1
    %p92 = scmp.ne.s32.totalorder %s87, %s89
    %p93 = scmp.eq.s32.totalorder %s11, 0
    %p94 = por %p92, %p93
    %p95 = scmp.ne.s32.totalorder %s87, %s89
    %p96 = scmp.eq.s32.totalorder %s16, 1
    %p97 = por %p95, %p96
    %p98 = scmp.ne.s32.totalorder %s89, %s90
    %p99 = scmp.eq.s32.totalorder %s16, 0
    %p100 = por %p98, %p99
    %p101 = scmp.ne.s32.totalorder %s89, %s90
    %p102 = scmp.eq.s32.totalorder %s17, 1
    %p103 = por %p101, %p102
    %p105 = scmp.ne.s32.totalorder %s90, %s104
    %p106 = scmp.eq.s32.totalorder %s17, 0
    %p107 = por %p105, %p106
    %s109 = sadd.s32 %s108, 1
    %p112 = scmp.eq.s32.totalorder %s11, 1
    %p113 = scmp.ne.s32.totalorder %s108, %s110
    %p114 = scmp.eq.s32.totalorder %s11, 0
    %p115 = por %p113, %p114
    %p116 = scmp.ne.s32.totalorder %s108, %s110
    %p117 = scmp.eq.s32.totalorder %s16, 1
    %p118 = por %p116, %p117
    %p119 = scmp.ne.s32.totalorder %s110, %s111
    %p120 = scmp.eq.s32.totalorder %s16, 0
    %p121 = por %p119, %p120
    %p122 = scmp.ne.s32.totalorder %s110, %s111
    %p123 = scmp.eq.s32.totalorder %s17, 1
    %p124 = por %p122, %p123
    %p126 = scmp.ne.s32.totalorder %s111, %s125
    %p127 = scmp.eq.s32.totalorder %s17, 0
    %p128 = por %p126, %p127
    %s129 = ssub.s32 %s11, %s18
    %p130 = scmp.eq.s32.totalorder %s129, 0
    %s132 = sadd.s32 %s131, 1
    %s133 = scalar_select %p130, %s131, %s132
    %p136 = pneg %p130
    %p137 = scmp.eq.s32.totalorder %s11, 1
    %p138 = por %p136, %p137
    %p139 = scmp.ne.s32.totalorder %s131, %s134
    %p140 = scmp.eq.s32.totalorder %s11, 0
    %p141 = por %p139, %p140
    %p142 = scmp.ne.s32.totalorder %s131, %s134
    %p143 = scmp.eq.s32.totalorder %s16, 1
    %p144 = por %p142, %p143
    %p145 = scmp.ne.s32.totalorder %s134, %s135
    %p146 = scmp.eq.s32.totalorder %s16, 0
    %p147 = por %p145, %p146
    %p148 = scmp.ne.s32.totalorder %s134, %s135
    %p149 = scmp.eq.s32.totalorder %s17, 1
    %p150 = por %p148, %p149
    %p152 = scmp.ne.s32.totalorder %s135, %s151
    %p153 = scmp.eq.s32.totalorder %s17, 0
    %p154 = por %p152, %p153
    %p155 = scmp.le.s32.totalorder 1, %s11
    %p156 = scmp.lt.s32.totalorder %s11, 3
    %p157 = pnand %p155, %p156
    %p158 = pneg %p157
    // Predicated region
    $region9: #{ca_layer.1} parent=5 // pred_check
      _
    $region10: #{ca_layer.1} parent=5 // pred_check_branch
      %160 = sbr.rel (%p157) target = $region12
    $region11: #{ca_layer.1} parent=5 // pred_region
      %s161 = ssub.s32 %s11, 1
      // Predicated region
      $region13: #{ca_layer.1} parent=11 // pred_check
        %p162 = pneg %p58
      $region14: #{ca_layer.1} parent=11 // pred_check_branch
        %164 = sbr.rel (%p162) target = $region16
      $region15: #{ca_layer.1} parent=11 // pred_region
        _
      $region16: #{ca_layer.1} parent=11 // pred_fallthru
        _
      // Predicated region
      $region17: #{ca_layer.1} parent=11 // pred_check
        %p165 = pneg %p79
      $region18: #{ca_layer.1} parent=11 // pred_check_branch
        %167 = sbr.rel (%p165) target = $region20
      $region19: #{ca_layer.1} parent=11 // pred_region
        _
      $region20: #{ca_layer.1} parent=11 // pred_fallthru
        _
      // Predicated region
      $region21: #{ca_layer.1} parent=11 // pred_check
        %p168 = pneg %p100
      $region22: #{ca_layer.1} parent=11 // pred_check_branch
        %170 = sbr.rel (%p168) target = $region24
      $region23: #{ca_layer.1} parent=11 // pred_region
        _
      $region24: #{ca_layer.1} parent=11 // pred_fallthru
        _
      // Predicated region
      $region25: #{ca_layer.1} parent=11 // pred_check
        %p171 = pneg %p121
      $region26: #{ca_layer.1} parent=11 // pred_check_branch
        %173 = sbr.rel (%p171) target = $region28
      $region27: #{ca_layer.1} parent=11 // pred_region
        _
      $region28: #{ca_layer.1} parent=11 // pred_fallthru
        _
    $region12: #{ca_layer.1} parent=5 // pred_fallthru
      _
    %p174 = scmp.lt.s32.totalorder %s11, 2
    // Predicated region
    $region29: #{ca_layer.1} parent=5 // pred_check
      %p175 = pneg %p174
    $region30: #{ca_layer.1} parent=5 // pred_check_branch
      %177 = sbr.rel (%p175) target = $region32
    $region31: #{ca_layer.1} parent=5 // pred_region
      // Predicated region
      $region33: #{ca_layer.1} parent=31 // pred_check
        %p178 = pneg %p31
      $region34: #{ca_layer.1} parent=31 // pred_check_branch
        %180 = sbr.rel (%p178) target = $region36
      $region35: #{ca_layer.1} parent=31 // pred_region
        %p181 = scmp.lt.s32.totalorder %s11, 1
        %s182 = scalar_select %p181, %s11, 1
        %s183 = smul.addr %s182, 2
        %s184 = smul.addr %s183, 8
        %s185 = scalar_lea.vmem %s0, %s184
      $region36: #{ca_layer.1} parent=31 // pred_fallthru
        _
    $region32: #{ca_layer.1} parent=5 // pred_fallthru
      _
    %p186 = scmp.le.s32.totalorder 1, %s11
    %p187 = scmp.lt.s32.totalorder %s11, 3
    %p188 = pnand %p186, %p187
    %p189 = pneg %p188
    // Predicated region
    $region37: #{ca_layer.1} parent=5 // pred_check
      _
    $region38: #{ca_layer.1} parent=5 // pred_check_branch
      %191 = sbr.rel (%p188) target = $region40
    $region39: #{ca_layer.1} parent=5 // pred_region
      %s192 = ssub.s32 %s11, 1
      %p193 = scmp.lt.s32.totalorder %s16, 1
      %s194 = scalar_select %p193, %s16, 1
      %s195 = smul.addr %s194, 2
      %s196 = smul.addr %s195, 8
      %s197 = scalar_lea.vmem %s0, %s196
      %p198 = pneg %p37
      %p199 = pneg %p34
      %p200 = pneg %p58
      %p201 = pneg %p55
      %p202 = pneg %p79
      %p203 = pneg %p76
      %p204 = pneg %p100
      %p205 = pneg %p97
      %p206 = pneg %p121
      %p207 = pneg %p118
      %p208 = pneg %p147
      %p209 = pneg %p144
      %p210 = scmp.lt.s32.totalorder %s16, 1
      %s211 = scalar_select %p210, %s16, 1
      %s212 = smul.addr %s211, 2
      %s213 = smul.addr %s212, 8
      %s214 = scalar_lea.vmem %s5, %s213
      %p215 = scmp.lt.s32.totalorder %s16, 1
      %s216 = scalar_select %p215, %s16, 1
      %s217 = smul.addr %s216, 2
      %s218 = smul.addr %s217, 8
      %s219 = scalar_lea.vmem %s0, %s218
      %p220 = scmp.lt.s32.totalorder %s16, 1
      %s221 = scalar_select %p220, %s16, 1
      %s222 = smul.addr %s221, 2
      %s223 = smul.addr %s222, 8
      %s224 = scalar_lea.vmem %s5, %s223
      %v225 = vld [vmem:[%s219] sm:$0xff]
      %v226 = vld [vmem:[%s219 + $0x8] sm:$0xff]
      %v227 = vadd.f32 %v225, %v226
      %228 = vadd.xlane.f32.xlu0 %v227
      %v229 = vpop.xlane.xlu0 %228
      %v230 = vmul.f32 %v229, 0.00390625
      %v231 = vld [vmem:[%s1] sm:$0xff]
      %v232 = vmul.f32 %v230, %v231
      %vm233 = vcmask 15360
      %v234 = vsel %vm233, %v232, 0.0
      %v235 = vrot.slane %v234, 4
      %v236 = vadd.f32 %v234, %v235
      %v237 = vrot.slane %v236, 2
      %v238 = vadd.f32 %v236, %v237
      %v239 = vrot.slane %v238, 1
      %v240 = vadd.f32 %v238, %v239
      %v241 = vld [vmem:[%s2] sm:$0x1]
      %v242 = vadd.f32 %v240, %v241
      %v243 = vmax.f32 %v242, 0.0
      %v244 = vlaneseq
      %v245 = vshrl.u32 %v244, 7
      %v246 = vsub.s32 0, %v245
      %v247 = vrot.slane %v243, %v246
      %249 = vbcast.lane.b32.xlu0 %v247, 256
      %v250 = vpop.permute.xlu0 %249
      %v251 = vld [vmem:[%s3] sm:$0x3]
      %v252 = vmul.f32 %v250, %v251
      %vm253 = vcmask 58368
      %v254 = vsel %vm253, %v252, 0.0
      %v255 = vrot.slane %v254, 4
      %v256 = vadd.f32 %v254, %v255
      %v257 = vrot.slane %v256, 2
      %v258 = vadd.f32 %v256, %v257
      %v259 = vrot.slane %v258, 1
      %v260 = vadd.f32 %v258, %v259
      %v261 = vld [vmem:[%s4] sm:$0x1]
      %v262 = vadd.f32 %v260, %v261
      %v263 = vxor.u32 %v262, 2147483648
      %v264 = vmul.f32 %v263, 1.442695
      %v265 = vpow.pop %v264
      %v266 = vadd.f32 %v265, 1.0
      %v267 = vrcp.pop %v266
      %v268 = vmul.f32 1.0, %v267
      %v269 = vlaneseq
      %v270 = vshrl.u32 %v269, 7
      %v271 = vsub.s32 0, %v270
      %v272 = vrot.slane %v268, %v271
      %274 = vbcast.lane.b32.xlu0 %v272, 256
      %v275 = vpop.permute.xlu0 %274
      %v276 = vmul.f32 %v225, %v275
      %v277 = vmul.f32 %v226, %v275
      %278 = vst [vmem:[%s224] sm:$0xff] %v276
      %279 = vst [vmem:[%s224 + $0x8] sm:$0xff] %v277
      %p280 = scmp.lt.s32.totalorder %s16, 1
      %s281 = scalar_select %p280, %s16, 1
      %s282 = smul.addr %s281, 2
      %s283 = smul.addr %s282, 8
      %s284 = scalar_lea.vmem %s5, %s283
      // Predicated region
      $region41: #{ca_layer.1} parent=39 // pred_check
        %p285 = pneg %p144
      $region42: #{ca_layer.1} parent=39 // pred_check_branch
        %287 = sbr.rel (%p285) target = $region44
      $region43: #{ca_layer.1} parent=39 // pred_region
        _
      $region44: #{ca_layer.1} parent=39 // pred_fallthru
        _
    $region40: #{ca_layer.1} parent=5 // pred_fallthru
      _
    %p288 = scmp.le.s32.totalorder 2, %s11
    // Predicated region
    $region45: #{ca_layer.1} parent=5 // pred_check
      %p289 = pneg %p288
    $region46: #{ca_layer.1} parent=5 // pred_check_branch
      %291 = sbr.rel (%p289) target = $region48
    $region47: #{ca_layer.1} parent=5 // pred_region
      %s292 = ssub.s32 %s11, 2
      // Predicated region
      $region49: #{ca_layer.1} parent=47 // pred_check
        %p293 = pneg %p150
      $region50: #{ca_layer.1} parent=47 // pred_check_branch
        %295 = sbr.rel (%p293) target = $region52
      $region51: #{ca_layer.1} parent=47 // pred_region
        %p296 = scmp.lt.s32.totalorder %s17, 1
        %s297 = scalar_select %p296, %s17, 1
        %s298 = smul.addr %s297, 2
        %s299 = smul.addr %s298, 8
        %s300 = scalar_lea.vmem %s5, %s299
      $region52: #{ca_layer.1} parent=47 // pred_fallthru
        _
    $region48: #{ca_layer.1} parent=5 // pred_fallthru
      _
  $region6: #{ca_layer.1} parent=0 // loop_footer
    %s15 = sadd.s32 1, %s11
  $region7: #{ca_layer.1} parent=0 // loop_footer_branch
    %10 = sbr.rel target = $region3
  $region8: #{ca_layer.1} parent=0 // loop_exit
    _

</llo_original>
